<compile_context>
chip_gen: v7x
topology: tpu7x:2x2x1
jax: 0.10.0
libtpu: 0.0.40
codegen_flags: <defaults>
</compile_context>

<pallas_src>
import functools

import jax
import jax.numpy as jnp
import numpy as np
from jax.experimental import pallas as pl
from jax.experimental.pallas import tpu as pltpu


def _mask_kernel(edge_ref, drop_ref, und_ref, masked_ref, cnt_ref, *, E):
    """edge_ref: [2,E] int32, drop_ref: [E,1] int32 (1 = masked/dropped)."""
    E2 = 2 * E

    drop_col = drop_ref[...]                      # [E, 1] int32, 1 = masked
    keep_col = 1 - drop_col                       # [E, 1] int32, 1 = remaining
    R = jnp.sum(keep_col)                         # number of remaining edges
    n_masked = E - R

    # ---- exclusive prefix ranks along the edge axis (one MXU dot) -----------
    # rank_keep[j] = #{k < j : keep[k]} ; rank_drop[j] = j - rank_keep[j]
    row_j = jax.lax.broadcasted_iota(jnp.int32, (E, E), 0)   # this edge j
    col_k = jax.lax.broadcasted_iota(jnp.int32, (E, E), 1)   # earlier edge k
    lt = (col_k < row_j).astype(jnp.float32)                 # [E, E]
    rank_keep = jnp.dot(lt, keep_col.astype(jnp.float32),
                        preferred_element_type=jnp.float32).astype(jnp.int32)
    edge_id = jax.lax.broadcasted_iota(jnp.int32, (E, 1), 0)  # [E, 1]
    rank_drop = edge_id - rank_keep                           # [E, 1]

    src = edge_ref[...].astype(jnp.float32)                   # [2, E]

    # ---- masked edges: packed left, -1 padded (one-hot scatter via MXU) -----
    i_E = jax.lax.broadcasted_iota(jnp.int32, (E, E), 1)      # destination col
    pos_m = jnp.where(drop_col == 1, rank_drop, E)            # E = "nowhere"
    S_m = (pos_m == i_E).astype(jnp.float32)                  # [E, E]
    masked_f = jnp.dot(src, S_m, preferred_element_type=jnp.float32)  # [2, E]
    col_E = jax.lax.broadcasted_iota(jnp.int32, (2, E), 1)
    masked_ref[...] = jnp.where(col_E < n_masked,
                                masked_f.astype(jnp.int32), jnp.int32(-1))

    # ---- undirected remaining edges: [remaining, remaining[::-1]] -----------
    i_2E = jax.lax.broadcasted_iota(jnp.int32, (E, E2), 1)
    pos_a = jnp.where(keep_col == 1, rank_keep, E2)           # forward copies
    S_a = (pos_a == i_2E).astype(jnp.float32)                 # [E, 2E]
    und_f = jnp.dot(src, S_a, preferred_element_type=jnp.float32)     # [2, 2E]

    pos_b = jnp.where(keep_col == 1, R + rank_keep, E2)       # reversed copies
    S_b = (pos_b == i_2E).astype(jnp.float32)                 # [E, 2E]
    src_rev = jnp.concatenate([edge_ref[1:2, :], edge_ref[0:1, :]],
                              axis=0).astype(jnp.float32)     # rows swapped
    und_f = und_f + jnp.dot(src_rev, S_b, preferred_element_type=jnp.float32)

    col_2E = jax.lax.broadcasted_iota(jnp.int32, (2, E2), 1)
    und_ref[...] = jnp.where(col_2E < 2 * R,
                             und_f.astype(jnp.int32), jnp.int32(-1))

    cnt_ref[0] = R


def mask_forward(edge_index, key, *, p):
    """Fixed-shape analog of Mask(p).forward(edge_index).

    Returns:
      remaining_und   [2, 2E] int32 (undirected remaining edges, -1 padded)
      masked_edges    [2, E]  int32 (masked edges packed left, -1 padded)
      mask            [E]     bool  (True = edge masked/dropped)
      num_remaining   [1]     int32
    """
    two, E = edge_index.shape
    assert two == 2
    # Bernoulli(p) drop mask drawn in the wrapper (pltpu hardware PRNG has no
    # CPU/interpret lowering; torch.bernoulli semantics are preserved).
    drop = jax.random.bernoulli(key, p, (E,))                 # bool [E]
    drop_col = drop.astype(jnp.int32).reshape(E, 1)

    # Rough upper bound on simultaneously-live E x E-class slabs + headroom.
    # TODO(synk): for very large E (~>1k), tile the output lane axis with a
    #             grid so only [E, tile] one-hot slabs are resident per step.
    vmem_est = 40 * E * E + (4 << 20)
    vmem_limit = int(min(max(vmem_est, 16 << 20), 60 << 20))

    kernel = functools.partial(_mask_kernel, E=int(E))
    und, masked, cnt = pl.pallas_call(
        kernel,
        out_shape=(
            jax.ShapeDtypeStruct((2, 2 * E), jnp.int32),   # undirected remaining
            jax.ShapeDtypeStruct((2, E), jnp.int32),       # masked edges
            jax.ShapeDtypeStruct((1,), jnp.int32),         # #remaining
        ),
        in_specs=[
            pl.BlockSpec(memory_space=pltpu.MemorySpace.VMEM),   # edge_index
            pl.BlockSpec(memory_space=pltpu.MemorySpace.VMEM),   # drop mask col
        ],
        out_specs=(
            pl.BlockSpec(memory_space=pltpu.MemorySpace.VMEM),
            pl.BlockSpec(memory_space=pltpu.MemorySpace.VMEM),
            pl.BlockSpec(memory_space=pltpu.MemorySpace.SMEM),
        ),
        compiler_params=pltpu.CompilerParams(vmem_limit_bytes=vmem_limit),
    )(edge_index, drop_col)
    return und, masked, drop, cnt


class Mask:
    """Python-side analog of the nn.Module; p is the only parameter."""

    def __init__(self, p):
        self.p = p

    def __call__(self, edge_index, key):
        remaining_und, masked_edges, mask, n_rem = mask_forward(
            edge_index, key, p=self.p)
        return (remaining_und, masked_edges, mask, n_rem)


if __name__ == "__main__":
    key = jax.random.PRNGKey(0)
    num_nodes, E, p = 16, 128, 0.3     # node ids must stay < 2^24 (f32-exact)
    k1, k2, k3 = jax.random.split(key, 3)
    src = jax.random.randint(k1, (E,), 0, num_nodes, dtype=jnp.int32)
    dst = jax.random.randint(k2, (E,), 0, num_nodes, dtype=jnp.int32)
    edge_index = jnp.stack([src, dst], axis=0)        # [2, E] int32

    model = Mask(p)
    remaining_und, masked_edges, mask, n_rem = model(edge_index, k3)
    jax.block_until_ready((remaining_und, masked_edges, mask, n_rem))

    # host-side reference check of the packing semantics, driven by the same
    # Bernoulli draw the kernel consumed
    m = np.asarray(mask).astype(bool)
    ei = np.asarray(edge_index)
    R = int(np.asarray(n_rem)[0])
    rem_ref = ei[:, ~m]
    msk_ref = ei[:, m]
    und_np = np.asarray(remaining_und)
    msk_np = np.asarray(masked_edges)

    assert R == rem_ref.shape[1]
    assert np.array_equal(msk_np[:, :E - R], msk_ref)
    assert np.all(msk_np[:, E - R:] == -1)
    assert np.array_equal(und_np[:, :R], rem_ref)
    assert np.array_equal(und_np[:, R:2 * R], rem_ref[::-1, :])
    assert np.all(und_np[:, 2 * R:] == -1)

    print("KERNEL_OK")
</pallas_src>

<mosaic_0001>
module attributes {stable_mosaic.version = 11 : i64} {
  func.func @_mask_kernel(%arg0: memref<2x128xi32, #tpu.memory_space<vmem>>, %arg1: memref<128x1xi32, #tpu.memory_space<vmem>>, %arg2: memref<2x256xi32, #tpu.memory_space<vmem>>, %arg3: memref<2x128xi32, #tpu.memory_space<vmem>>, %arg4: memref<1xi32, #tpu.memory_space<smem>>) attributes {dimension_semantics = [], scalar_prefetch = 0 : i64, scratch_operands = 0 : i64, tpu.core_type = #tpu.core_type<tc>} {
    %c0 = arith.constant 0 : index
    %c0_0 = arith.constant 0 : index
    %0 = vector.load %arg1[%c0, %c0_0] : memref<128x1xi32, #tpu.memory_space<vmem>>, vector<128x1xi32>
    %c1_i32 = arith.constant 1 : i32
    %1 = vector.broadcast %c1_i32 : i32 to vector<128x1xi32>
    %2 = arith.subi %1, %0 : vector<128x1xi32>
    %3 = vector.shape_cast %2 : vector<128x1xi32> to vector<1x128x1xi32>
    %cst = arith.constant dense<0> : vector<1xi32>
    %4 = vector.multi_reduction <add>, %3, %cst [1, 2] : vector<1x128x1xi32> to vector<1xi32>
    %5 = vector.shape_cast %4 : vector<1xi32> to vector<1x1x1xi32>
    %6 = vector.extract %5[0, 0, 0] : i32 from vector<1x1x1xi32>
    %c128_i32 = arith.constant 128 : i32
    %7 = arith.subi %c128_i32, %6 : i32
    %8 = tpu.iota {dimensions = array<i32: 0>} : vector<128x128xi32>
    %9 = tpu.iota {dimensions = array<i32: 1>} : vector<128x128xi32>
    %10 = arith.cmpi slt, %9, %8 : vector<128x128xi32>
    %11 = arith.extui %10 : vector<128x128xi1> to vector<128x128xi32>
    %12 = arith.sitofp %11 : vector<128x128xi32> to vector<128x128xf32>
    %13 = arith.sitofp %2 : vector<128x1xi32> to vector<128x1xf32>
    %cst_1 = arith.constant dense<0.000000e+00> : vector<128x1xf32>
    %14 = tpu.matmul %12, %13, %cst_1 {dimension_numbers = #tpu.dot_dimension_numbers<[1], [0], [0], [1], [0, 0, 1, 1], [], []>} : vector<128x128xf32>, vector<128x1xf32>, vector<128x1xf32> -> vector<128x1xf32>
    %15 = arith.fptosi %14 : vector<128x1xf32> to vector<128x1xi32>
    %16 = tpu.iota {dimensions = array<i32: 0>} : vector<128x1xi32>
    %17 = arith.subi %16, %15 : vector<128x1xi32>
    %c0_2 = arith.constant 0 : index
    %c0_3 = arith.constant 0 : index
    %18 = vector.load %arg0[%c0_2, %c0_3] : memref<2x128xi32, #tpu.memory_space<vmem>>, vector<2x128xi32>
    %19 = arith.sitofp %18 : vector<2x128xi32> to vector<2x128xf32>
    %20 = tpu.iota {dimensions = array<i32: 1>} : vector<128x128xi32>
    %c1_i32_4 = arith.constant 1 : i32
    %21 = vector.broadcast %c1_i32_4 : i32 to vector<128x1xi32>
    %22 = arith.cmpi eq, %0, %21 : vector<128x1xi32>
    %c128_i32_5 = arith.constant 128 : i32
    %23 = vector.broadcast %c128_i32_5 : i32 to vector<128x1xi32>
    %24 = arith.select %22, %17, %23 : vector<128x1xi1>, vector<128x1xi32>
    %25 = vector.broadcast %24 : vector<128x1xi32> to vector<128x128xi32>
    %26 = arith.cmpi eq, %25, %20 : vector<128x128xi32>
    %27 = arith.extui %26 : vector<128x128xi1> to vector<128x128xi32>
    %28 = arith.sitofp %27 : vector<128x128xi32> to vector<128x128xf32>
    %cst_6 = arith.constant dense<0.000000e+00> : vector<2x128xf32>
    %29 = tpu.matmul %19, %28, %cst_6 {dimension_numbers = #tpu.dot_dimension_numbers<[1], [0], [0], [1], [0, 0, 1, 1], [], []>} : vector<2x128xf32>, vector<128x128xf32>, vector<2x128xf32> -> vector<2x128xf32>
    %30 = tpu.iota {dimensions = array<i32: 1>} : vector<2x128xi32>
    %31 = vector.broadcast %7 : i32 to vector<2x128xi32>
    %32 = arith.cmpi slt, %30, %31 : vector<2x128xi32>
    %33 = arith.fptosi %29 : vector<2x128xf32> to vector<2x128xi32>
    %c-1_i32 = arith.constant -1 : i32
    %34 = vector.broadcast %c-1_i32 : i32 to vector<2x128xi32>
    %35 = arith.select %32, %33, %34 : vector<2x128xi1>, vector<2x128xi32>
    %c0_7 = arith.constant 0 : index
    %c0_8 = arith.constant 0 : index
    %36 = vector.load %arg3[%c0_7, %c0_8] : memref<2x128xi32, #tpu.memory_space<vmem>>, vector<2x128xi32>
    tpu.vector_store %arg3[%c0_7, %c0_8], %35 {strides = array<i32>} : memref<2x128xi32, #tpu.memory_space<vmem>>, vector<2x128xi32>,
    %37 = tpu.iota {dimensions = array<i32: 1>} : vector<128x256xi32>
    %c1_i32_9 = arith.constant 1 : i32
    %38 = vector.broadcast %c1_i32_9 : i32 to vector<128x1xi32>
    %39 = arith.cmpi eq, %2, %38 : vector<128x1xi32>
    %c256_i32 = arith.constant 256 : i32
    %40 = vector.broadcast %c256_i32 : i32 to vector<128x1xi32>
    %41 = arith.select %39, %15, %40 : vector<128x1xi1>, vector<128x1xi32>
    %42 = vector.broadcast %41 : vector<128x1xi32> to vector<128x256xi32>
    %43 = arith.cmpi eq, %42, %37 : vector<128x256xi32>
    %44 = arith.extui %43 : vector<128x256xi1> to vector<128x256xi32>
    %45 = arith.sitofp %44 : vector<128x256xi32> to vector<128x256xf32>
    %cst_10 = arith.constant dense<0.000000e+00> : vector<2x256xf32>
    %46 = tpu.matmul %19, %45, %cst_10 {dimension_numbers = #tpu.dot_dimension_numbers<[1], [0], [0], [1], [0, 0, 1, 1], [], []>} : vector<2x128xf32>, vector<128x256xf32>, vector<2x256xf32> -> vector<2x256xf32>
    %c1_i32_11 = arith.constant 1 : i32
    %47 = vector.broadcast %c1_i32_11 : i32 to vector<128x1xi32>
    %48 = arith.cmpi eq, %2, %47 : vector<128x1xi32>
    %49 = vector.broadcast %6 : i32 to vector<128x1xi32>
    %50 = arith.addi %49, %15 : vector<128x1xi32>
    %c256_i32_12 = arith.constant 256 : i32
    %51 = vector.broadcast %c256_i32_12 : i32 to vector<128x1xi32>
    %52 = arith.select %48, %50, %51 : vector<128x1xi1>, vector<128x1xi32>
    %53 = vector.broadcast %52 : vector<128x1xi32> to vector<128x256xi32>
    %54 = arith.cmpi eq, %53, %37 : vector<128x256xi32>
    %55 = arith.extui %54 : vector<128x256xi1> to vector<128x256xi32>
    %56 = arith.sitofp %55 : vector<128x256xi32> to vector<128x256xf32>
    %c1 = arith.constant 1 : index
    %c0_13 = arith.constant 0 : index
    %57 = vector.load %arg0[%c1, %c0_13] : memref<2x128xi32, #tpu.memory_space<vmem>>, vector<1x128xi32>
    %c0_14 = arith.constant 0 : index
    %c0_15 = arith.constant 0 : index
    %58 = vector.load %arg0[%c0_14, %c0_15] : memref<2x128xi32, #tpu.memory_space<vmem>>, vector<1x128xi32>
    %59 = tpu.concatenate %57, %58 in 0 : vector<1x128xi32>, vector<1x128xi32> -> vector<2x128xi32>
    %60 = arith.sitofp %59 : vector<2x128xi32> to vector<2x128xf32>
    %cst_16 = arith.constant dense<0.000000e+00> : vector<2x256xf32>
    %61 = tpu.matmul %60, %56, %cst_16 {dimension_numbers = #tpu.dot_dimension_numbers<[1], [0], [0], [1], [0, 0, 1, 1], [], []>} : vector<2x128xf32>, vector<128x256xf32>, vector<2x256xf32> -> vector<2x256xf32>
    %62 = arith.addf %46, %61 : vector<2x256xf32>
    %63 = tpu.iota {dimensions = array<i32: 1>} : vector<2x256xi32>
    %c2_i32 = arith.constant 2 : i32
    %64 = arith.muli %c2_i32, %6 : i32
    %65 = vector.broadcast %64 : i32 to vector<2x256xi32>
    %66 = arith.cmpi slt, %63, %65 : vector<2x256xi32>
    %67 = arith.fptosi %62 : vector<2x256xf32> to vector<2x256xi32>
    %c-1_i32_17 = arith.constant -1 : i32
    %68 = vector.broadcast %c-1_i32_17 : i32 to vector<2x256xi32>
    %69 = arith.select %66, %67, %68 : vector<2x256xi1>, vector<2x256xi32>
    %c0_18 = arith.constant 0 : index
    %c0_19 = arith.constant 0 : index
    %70 = vector.load %arg2[%c0_18, %c0_19] : memref<2x256xi32, #tpu.memory_space<vmem>>, vector<2x256xi32>
    tpu.vector_store %arg2[%c0_18, %c0_19], %69 {strides = array<i32>} : memref<2x256xi32, #tpu.memory_space<vmem>>, vector<2x256xi32>,
    %c0_20 = arith.constant 0 : index
    %71 = memref.load %arg4[%c0_20] : memref<1xi32, #tpu.memory_space<smem>>
    memref.store %6, %arg4[%c0_20] : memref<1xi32, #tpu.memory_space<smem>>
    return
  }
}

</mosaic_0001>

<llo_original>
// kernel: tpu_custom_call.1
$region0: #{tpu_custom_call.1}
  #allocation0 [shape = 'u32[]', space=smem, size = 0x4, offset = 0x4, fixed_abs, tag = 'smem constant byte address 0x4 - core index']
  #allocation1 [shape = 'u32[144,128]{1,0:T(1,128)}', space=vmem, size = 0x12000, scoped, tag = 'internal scratch']
  %s0 = inlined_call_operand.vmem [shape: s32[2,128], index: 0, kind: input, shape index: {}]
  %s1 = inlined_call_operand.vmem [shape: s32[128,1], index: 1, kind: input, shape index: {}]
  %s2 = inlined_call_operand.hbm [shape: s32[2,256], index: 2, kind: output, shape index: {0}]
  %s3 = inlined_call_operand.hbm [shape: s32[2,128], index: 3, kind: output, shape index: {1}]
  %s4 = inlined_call_operand.hbm [shape: s32[1], index: 4, kind: output, shape index: {2}]
  %5 = xla_tuple %s2, %s3, %s4
  %s6 = sld [smem:[#allocation0]]
  $region34: #{tpu_custom_call.1} parent=0
    _
  %s8 = ssub.s32 1, %s6
  %s9 = scalar_select 0, %s8, %s6
  $region1: #{tpu_custom_call.1} parent=0
    #allocation2 [shape = 'u8[2048]{0}', space=vmem, size = 0x800, scoped, tag = 'output window, operand 0, single buffered']
    #allocation3 [shape = 's32[1]{0}', space=sflag, size = 0x4, scoped, tag = 'scoped memory for tpu_custom_call.1']
    #allocation4 [shape = 's32[1]{0}', space=sflag, size = 0x4, scoped, tag = 'scoped memory for tpu_custom_call.1']
    #allocation5 [shape = 'u8[1024]{0}', space=vmem, size = 0x400, scoped, tag = 'output window, operand 1, single buffered']
    #allocation6 [shape = 's32[1]{0}', space=sflag, size = 0x4, scoped, tag = 'scoped memory for tpu_custom_call.1']
    #allocation7 [shape = 'u8[512]{0}', space=smem, size = 0x200, scoped, tag = 'output window, operand 2, single buffered']
    %10 = vsyncpa [#allocation3], 0
    %11 = vsyncpa [#allocation6], 0
    %12 = vsyncpa [#allocation4], 0
    // Predicated region
    $region2: #{tpu_custom_call.1} parent=1 // pred_check
      _
    $region3: #{tpu_custom_call.1} parent=1 // pred_check_branch
      %14 = sbr.rel (0) target = $region5
    $region4: #{tpu_custom_call.1} parent=1 // pred_region
      _
    $region5: #{tpu_custom_call.1} parent=1 // pred_fallthru
      _
    // Predicated region
    $region6: #{tpu_custom_call.1} parent=1 // pred_check
      _
    $region7: #{tpu_custom_call.1} parent=1 // pred_check_branch
      %16 = sbr.rel (0) target = $region9
    $region8: #{tpu_custom_call.1} parent=1 // pred_region
      _
    $region9: #{tpu_custom_call.1} parent=1 // pred_fallthru
      _
    %v17 = vld [vmem:[%s1] sm:$0xff]
    %v18 = vld [vmem:[%s1 + $0x8] sm:$0xff]
    %v19 = vld [vmem:[%s1 + $0x10] sm:$0xff]
    %v20 = vld [vmem:[%s1 + $0x18] sm:$0xff]
    %v21 = vld [vmem:[%s1 + $0x20] sm:$0xff]
    %v22 = vld [vmem:[%s1 + $0x28] sm:$0xff]
    %v23 = vld [vmem:[%s1 + $0x30] sm:$0xff]
    %v24 = vld [vmem:[%s1 + $0x38] sm:$0xff]
    %v25 = vld [vmem:[%s1 + $0x40] sm:$0xff]
    %v26 = vld [vmem:[%s1 + $0x48] sm:$0xff]
    %v27 = vld [vmem:[%s1 + $0x50] sm:$0xff]
    %v28 = vld [vmem:[%s1 + $0x58] sm:$0xff]
    %v29 = vld [vmem:[%s1 + $0x60] sm:$0xff]
    %v30 = vld [vmem:[%s1 + $0x68] sm:$0xff]
    %v31 = vld [vmem:[%s1 + $0x70] sm:$0xff]
    %v32 = vld [vmem:[%s1 + $0x78] sm:$0xff]
    %v33 = vsub.s32 1, %v17
    %v34 = vsub.s32 1, %v18
    %v35 = vsub.s32 1, %v19
    %v36 = vsub.s32 1, %v20
    %v37 = vsub.s32 1, %v21
    %v38 = vsub.s32 1, %v22
    %v39 = vsub.s32 1, %v23
    %v40 = vsub.s32 1, %v24
    %v41 = vsub.s32 1, %v25
    %v42 = vsub.s32 1, %v26
    %v43 = vsub.s32 1, %v27
    %v44 = vsub.s32 1, %v28
    %v45 = vsub.s32 1, %v29
    %v46 = vsub.s32 1, %v30
    %v47 = vsub.s32 1, %v31
    %v48 = vsub.s32 1, %v32
    %vm49 = vcmask 7168
    %v50 = vsel %vm49, %v33, 0
    %v51 = vsel %vm49, %v34, 0
    %v52 = vsel %vm49, %v35, 0
    %v53 = vsel %vm49, %v36, 0
    %v54 = vsel %vm49, %v37, 0
    %v55 = vadd.s32 %v50, %v54
    %v56 = vsel %vm49, %v38, 0
    %v57 = vadd.s32 %v51, %v56
    %v58 = vsel %vm49, %v39, 0
    %v59 = vadd.s32 %v52, %v58
    %v60 = vsel %vm49, %v40, 0
    %v61 = vadd.s32 %v53, %v60
    %v62 = vsel %vm49, %v41, 0
    %v63 = vadd.s32 %v55, %v62
    %v64 = vsel %vm49, %v42, 0
    %v65 = vadd.s32 %v57, %v64
    %v66 = vsel %vm49, %v43, 0
    %v67 = vadd.s32 %v59, %v66
    %v68 = vsel %vm49, %v44, 0
    %v69 = vadd.s32 %v61, %v68
    %v70 = vsel %vm49, %v45, 0
    %v71 = vadd.s32 %v63, %v70
    %v72 = vsel %vm49, %v46, 0
    %v73 = vadd.s32 %v65, %v72
    %v74 = vsel %vm49, %v47, 0
    %v75 = vadd.s32 %v67, %v74
    %v76 = vsel %vm49, %v48, 0
    %v77 = vadd.s32 %v69, %v76
    %v78 = vadd.s32 %v71, %v73
    %v79 = vadd.s32 %v75, %v77
    %v80 = vadd.s32 %v78, %v79
    %v81 = vand.u32 %v80, 65535
    %v82 = vshrl.u32 %v80, 16
    %v83 = vcvt.s32.f32 %v81
    %v84 = vcvt.s32.f32 %v82
    %85 = vadd.xlane.f32.xlu0 %v83
    %v86 = vpop.xlane.xlu0 %85
    %87 = vadd.xlane.f32.xlu0 %v84
    %v88 = vpop.xlane.xlu0 %87
    %v89 = vcvt.f32.s32 %v86
    %v90 = vcvt.f32.s32 %v88
    %v91 = vshll.u32 %v90, 16
    %v92 = vadd.s32 %v91, %v89
    %v93 = vrot.slane %v92, 4
    %v94 = vadd.s32 %v92, %v93
    %v95 = vrot.slane %v94, 2
    %v96 = vadd.s32 %v94, %v95
    %v97 = vrot.slane %v96, 1
    %v98 = vadd.s32 %v96, %v97
    %s99 = vtos %v98
    %s100 = ssub.s32 128, %s99
    %v101 = vlaneseq
    %v102 = vshrl.u32 %v101, 7
    %v103 = vadd.s32 %v102, 8
    %v104 = vadd.s32 %v102, 16
    %v105 = vadd.s32 %v102, 24
    %v106 = vadd.s32 %v102, 32
    %v107 = vadd.s32 %v102, 40
    %v108 = vadd.s32 %v102, 48
    %v109 = vadd.s32 %v102, 56
    %v110 = vadd.s32 %v102, 64
    %v111 = vadd.s32 %v102, 72
    %v112 = vadd.s32 %v102, 80
    %v113 = vadd.s32 %v102, 88
    %v114 = vadd.s32 %v102, 96
    %v115 = vadd.s32 %v102, 104
    %v116 = vadd.s32 %v102, 112
    %v117 = vadd.s32 %v102, 120
    %v118 = vlaneseq
    %v119 = vand.u32 %v118, 127
    %vm120 = vcmp.lt.s32.totalorder %v119, %v102
    %vm121 = vcmp.lt.s32.totalorder %v119, %v103
    %vm122 = vcmp.lt.s32.totalorder %v119, %v104
    %vm123 = vcmp.lt.s32.totalorder %v119, %v105
    %vm124 = vcmp.lt.s32.totalorder %v119, %v106
    %vm125 = vcmp.lt.s32.totalorder %v119, %v107
    %vm126 = vcmp.lt.s32.totalorder %v119, %v108
    %vm127 = vcmp.lt.s32.totalorder %v119, %v109
    %vm128 = vcmp.lt.s32.totalorder %v119, %v110
    %vm129 = vcmp.lt.s32.totalorder %v119, %v111
    %vm130 = vcmp.lt.s32.totalorder %v119, %v112
    %vm131 = vcmp.lt.s32.totalorder %v119, %v113
    %vm132 = vcmp.lt.s32.totalorder %v119, %v114
    %vm133 = vcmp.lt.s32.totalorder %v119, %v115
    %vm134 = vcmp.lt.s32.totalorder %v119, %v116
    %vm135 = vcmp.lt.s32.totalorder %v119, %v117
    %v136 = vsel %vm120, 1, 0
    %v137 = vsel %vm121, 1, 0
    %v138 = vsel %vm122, 1, 0
    %v139 = vsel %vm123, 1, 0
    %v140 = vsel %vm124, 1, 0
    %v141 = vsel %vm125, 1, 0
    %v142 = vsel %vm126, 1, 0
    %v143 = vsel %vm127, 1, 0
    %v144 = vsel %vm128, 1, 0
    %v145 = vsel %vm129, 1, 0
    %v146 = vsel %vm130, 1, 0
    %v147 = vsel %vm131, 1, 0
    %v148 = vsel %vm132, 1, 0
    %v149 = vsel %vm133, 1, 0
    %v150 = vsel %vm134, 1, 0
    %v151 = vsel %vm135, 1, 0
    %v152 = vcvt.s32.f32 %v136
    %v153 = vcvt.s32.f32 %v137
    %v154 = vcvt.s32.f32 %v138
    %v155 = vcvt.s32.f32 %v139
    %v156 = vcvt.s32.f32 %v140
    %v157 = vcvt.s32.f32 %v141
    %v158 = vcvt.s32.f32 %v142
    %v159 = vcvt.s32.f32 %v143
    %v160 = vcvt.s32.f32 %v144
    %v161 = vcvt.s32.f32 %v145
    %v162 = vcvt.s32.f32 %v146
    %v163 = vcvt.s32.f32 %v147
    %v164 = vcvt.s32.f32 %v148
    %v165 = vcvt.s32.f32 %v149
    %v166 = vcvt.s32.f32 %v150
    %v167 = vcvt.s32.f32 %v151
    %v168 = vcvt.s32.f32 %v33
    %v169 = vcvt.s32.f32 %v34
    %v170 = vcvt.s32.f32 %v35
    %v171 = vcvt.s32.f32 %v36
    %v172 = vcvt.s32.f32 %v37
    %v173 = vcvt.s32.f32 %v38
    %v174 = vcvt.s32.f32 %v39
    %v175 = vcvt.s32.f32 %v40
    %v176 = vcvt.s32.f32 %v41
    %v177 = vcvt.s32.f32 %v42
    %v178 = vcvt.s32.f32 %v43
    %v179 = vcvt.s32.f32 %v44
    %v180 = vcvt.s32.f32 %v45
    %v181 = vcvt.s32.f32 %v46
    %v182 = vcvt.s32.f32 %v47
    %v183 = vcvt.s32.f32 %v48
    %184 = vmatprep.subr.mxu0 0.0
    %185 = vmatpush1.msra.mxu0 %v168
    %186 = vmatprep.subr.mxu0 0.0
    %187 = vmatpush1.msra.mxu0 %v169
    %188 = vmatprep.subr.mxu0 0.0
    %189 = vmatpush1.msra.mxu0 %v170
    %190 = vmatprep.subr.mxu0 0.0
    %191 = vmatpush1.msra.mxu0 %v171
    %192 = vmatprep.subr.mxu0 0.0
    %193 = vmatpush1.msra.mxu0 %v172
    %194 = vmatprep.subr.mxu0 0.0
    %195 = vmatpush1.msra.mxu0 %v173
    %196 = vmatprep.subr.mxu0 0.0
    %197 = vmatpush1.msra.mxu0 %v174
    %198 = vmatprep.subr.mxu0 0.0
    %199 = vmatpush1.msra.mxu0 %v175
    %200 = vmatprep.subr.mxu0 0.0
    %201 = vmatpush1.msra.mxu0 %v176
    %202 = vmatprep.subr.mxu0 0.0
    %203 = vmatpush1.msra.mxu0 %v177
    %204 = vmatprep.subr.mxu0 0.0
    %205 = vmatpush1.msra.mxu0 %v178
    %206 = vmatprep.subr.mxu0 0.0
    %207 = vmatpush1.msra.mxu0 %v179
    %208 = vmatprep.subr.mxu0 0.0
    %209 = vmatpush1.msra.mxu0 %v180
    %210 = vmatprep.subr.mxu0 0.0
    %211 = vmatpush1.msra.mxu0 %v181
    %212 = vmatprep.subr.mxu0 0.0
    %213 = vmatpush1.msra.mxu0 %v182
    %214 = vmatprep.subr.mxu0 0.0
    %215 = vmatpush1.msra.mxu0 %v183
    %216 = vmatprep.subr.mxu0 0.0
    %217 = vmatpush1.msra.mxu0 0.0
    %218 = vmatprep.subr.mxu0 0.0
    %219 = vmatpush1.msra.mxu0 0.0
    %220 = vmatprep.subr.mxu0 0.0
    %221 = vmatpush1.msra.mxu0 0.0
    %222 = vmatprep.subr.mxu0 0.0
    %223 = vmatpush1.msra.mxu0 0.0
    %224 = vmatprep.subr.mxu0 0.0
    %225 = vmatpush1.msra.mxu0 0.0
    %226 = vmatprep.subr.mxu0 0.0
    %227 = vmatpush1.msra.mxu0 0.0
    %228 = vmatprep.subr.mxu0 0.0
    %229 = vmatpush1.msra.mxu0 0.0
    %230 = vmatprep.subr.mxu0 0.0
    %231 = vmatpush1.msra.mxu0 0.0
    %232 = vmatprep.subr.mxu0 0.0
    %233 = vmatpush1.msra.mxu0 0.0
    %234 = vmatprep.subr.mxu0 0.0
    %235 = vmatpush1.msra.mxu0 0.0
    %236 = vmatprep.subr.mxu0 0.0
    %237 = vmatpush1.msra.mxu0 0.0
    %238 = vmatprep.subr.mxu0 0.0
    %239 = vmatpush1.msra.mxu0 0.0
    %240 = vmatprep.subr.mxu0 0.0
    %241 = vmatpush1.msra.mxu0 0.0
    %242 = vmatprep.subr.mxu0 0.0
    %243 = vmatpush1.msra.mxu0 0.0
    %244 = vmatprep.subr.mxu0 0.0
    %245 = vmatpush1.msra.mxu0 0.0
    %246 = vmatprep.subr.mxu0 0.0
    %247 = vmatpush1.msra.mxu0 0.0
    %248 = vmatprep.mubr.f32.mxu0 0.0
    %249 = vmatmul.mubr.f32.gmra.mrb[0].mxu0 %v152
    %v250 = vpop.f32.mrb[0].mxu0
    %v251 = vadd.f32 0.0, %v250
    %v252 = vpop.f32.mrb[0].mxu0
    %253 = vmatprep.mubr.f32.mxu0 0.0
    %254 = vmatmul.mubr.f32.gmra.mrb[0].mxu0 %v153
    %v255 = vpop.f32.mrb[0].mxu0
    %v256 = vadd.f32 0.0, %v255
    %v257 = vpop.f32.mrb[0].mxu0
    %258 = vmatprep.mubr.f32.mxu0 0.0
    %259 = vmatmul.mubr.f32.gmra.mrb[0].mxu0 %v154
    %v260 = vpop.f32.mrb[0].mxu0
    %v261 = vadd.f32 0.0, %v260
    %v262 = vpop.f32.mrb[0].mxu0
    %263 = vmatprep.mubr.f32.mxu0 0.0
    %264 = vmatmul.mubr.f32.gmra.mrb[0].mxu0 %v155
    %v265 = vpop.f32.mrb[0].mxu0
    %v266 = vadd.f32 0.0, %v265
    %v267 = vpop.f32.mrb[0].mxu0
    %268 = vmatprep.mubr.f32.mxu0 0.0
    %269 = vmatmul.mubr.f32.gmra.mrb[0].mxu0 %v156
    %v270 = vpop.f32.mrb[0].mxu0
    %v271 = vadd.f32 0.0, %v270
    %v272 = vpop.f32.mrb[0].mxu0
    %273 = vmatprep.mubr.f32.mxu0 0.0
    %274 = vmatmul.mubr.f32.gmra.mrb[0].mxu0 %v157
    %v275 = vpop.f32.mrb[0].mxu0
    %v276 = vadd.f32 0.0, %v275
    %v277 = vpop.f32.mrb[0].mxu0
    %278 = vmatprep.mubr.f32.mxu0 0.0
    %279 = vmatmul.mubr.f32.gmra.mrb[0].mxu0 %v158
    %v280 = vpop.f32.mrb[0].mxu0
    %v281 = vadd.f32 0.0, %v280
    %v282 = vpop.f32.mrb[0].mxu0
    %283 = vmatprep.mubr.f32.mxu0 0.0
    %284 = vmatmul.mubr.f32.gmra.mrb[0].mxu0 %v159
    %v285 = vpop.f32.mrb[0].mxu0
    %v286 = vadd.f32 0.0, %v285
    %v287 = vpop.f32.mrb[0].mxu0
    %288 = vmatprep.mubr.f32.mxu0 0.0
    %289 = vmatmul.mubr.f32.gmra.mrb[0].mxu0 %v160
    %v290 = vpop.f32.mrb[0].mxu0
    %v291 = vadd.f32 0.0, %v290
    %v292 = vpop.f32.mrb[0].mxu0
    %293 = vmatprep.mubr.f32.mxu0 0.0
    %294 = vmatmul.mubr.f32.gmra.mrb[0].mxu0 %v161
    %v295 = vpop.f32.mrb[0].mxu0
    %v296 = vadd.f32 0.0, %v295
    %v297 = vpop.f32.mrb[0].mxu0
    %298 = vmatprep.mubr.f32.mxu0 0.0
    %299 = vmatmul.mubr.f32.gmra.mrb[0].mxu0 %v162
    %v300 = vpop.f32.mrb[0].mxu0
    %v301 = vadd.f32 0.0, %v300
    %v302 = vpop.f32.mrb[0].mxu0
    %303 = vmatprep.mubr.f32.mxu0 0.0
    %304 = vmatmul.mubr.f32.gmra.mrb[0].mxu0 %v163
    %v305 = vpop.f32.mrb[0].mxu0
    %v306 = vadd.f32 0.0, %v305
    %v307 = vpop.f32.mrb[0].mxu0
    %308 = vmatprep.mubr.f32.mxu0 0.0
    %309 = vmatmul.mubr.f32.gmra.mrb[0].mxu0 %v164
    %v310 = vpop.f32.mrb[0].mxu0
    %v311 = vadd.f32 0.0, %v310
    %v312 = vpop.f32.mrb[0].mxu0
    %313 = vmatprep.mubr.f32.mxu0 0.0
    %314 = vmatmul.mubr.f32.gmra.mrb[0].mxu0 %v165
    %v315 = vpop.f32.mrb[0].mxu0
    %v316 = vadd.f32 0.0, %v315
    %v317 = vpop.f32.mrb[0].mxu0
    %318 = vmatprep.mubr.f32.mxu0 0.0
    %319 = vmatmul.mubr.f32.gmra.mrb[0].mxu0 %v166
    %v320 = vpop.f32.mrb[0].mxu0
    %v321 = vadd.f32 0.0, %v320
    %v322 = vpop.f32.mrb[0].mxu0
    %323 = vmatprep.mubr.f32.mxu0 0.0
    %324 = vmatmul.mubr.f32.gmra.mrb[0].mxu0 %v167
    %v325 = vpop.f32.mrb[0].mxu0
    %v326 = vadd.f32 0.0, %v325
    %v327 = vpop.f32.mrb[0].mxu0
    %328 = vdwg.mxu0
    %v329 = vcvt.f32.s32.to.zero.pseudo %v251
    %v330 = vcvt.f32.s32.to.zero.pseudo %v256
    %v331 = vcvt.f32.s32.to.zero.pseudo %v261
    %v332 = vcvt.f32.s32.to.zero.pseudo %v266
    %v333 = vcvt.f32.s32.to.zero.pseudo %v271
    %v334 = vcvt.f32.s32.to.zero.pseudo %v276
    %v335 = vcvt.f32.s32.to.zero.pseudo %v281
    %v336 = vcvt.f32.s32.to.zero.pseudo %v286
    %v337 = vcvt.f32.s32.to.zero.pseudo %v291
    %v338 = vcvt.f32.s32.to.zero.pseudo %v296
    %v339 = vcvt.f32.s32.to.zero.pseudo %v301
    %v340 = vcvt.f32.s32.to.zero.pseudo %v306
    %v341 = vcvt.f32.s32.to.zero.pseudo %v311
    %v342 = vcvt.f32.s32.to.zero.pseudo %v316
    %v343 = vcvt.f32.s32.to.zero.pseudo %v321
    %v344 = vcvt.f32.s32.to.zero.pseudo %v326
    %v345 = vsub.s32 %v102, %v329
    %v346 = vsub.s32 %v103, %v330
    %v347 = vsub.s32 %v104, %v331
    %v348 = vsub.s32 %v105, %v332
    %v349 = vsub.s32 %v106, %v333
    %v350 = vsub.s32 %v107, %v334
    %v351 = vsub.s32 %v108, %v335
    %v352 = vsub.s32 %v109, %v336
    %v353 = vsub.s32 %v110, %v337
    %v354 = vsub.s32 %v111, %v338
    %v355 = vsub.s32 %v112, %v339
    %v356 = vsub.s32 %v113, %v340
    %v357 = vsub.s32 %v114, %v341
    %v358 = vsub.s32 %v115, %v342
    %v359 = vsub.s32 %v116, %v343
    %v360 = vsub.s32 %v117, %v344
    %v361 = vld [vmem:[%s0] sm:$0x3]
    %v362 = vcvt.s32.f32 %v361
    %vm363 = vcmp.eq.s32.totalorder %v17, 1
    %vm364 = vcmp.eq.s32.totalorder %v18, 1
    %vm365 = vcmp.eq.s32.totalorder %v19, 1
    %vm366 = vcmp.eq.s32.totalorder %v20, 1
    %vm367 = vcmp.eq.s32.totalorder %v21, 1
    %vm368 = vcmp.eq.s32.totalorder %v22, 1
    %vm369 = vcmp.eq.s32.totalorder %v23, 1
    %vm370 = vcmp.eq.s32.totalorder %v24, 1
    %vm371 = vcmp.eq.s32.totalorder %v25, 1
    %vm372 = vcmp.eq.s32.totalorder %v26, 1
    %vm373 = vcmp.eq.s32.totalorder %v27, 1
    %vm374 = vcmp.eq.s32.totalorder %v28, 1
    %vm375 = vcmp.eq.s32.totalorder %v29, 1
    %vm376 = vcmp.eq.s32.totalorder %v30, 1
    %vm377 = vcmp.eq.s32.totalorder %v31, 1
    %vm378 = vcmp.eq.s32.totalorder %v32, 1
    %v379 = vsel %vm363, %v345, 128
    %v380 = vsel %vm364, %v346, 128
    %v381 = vsel %vm365, %v347, 128
    %v382 = vsel %vm366, %v348, 128
    %v383 = vsel %vm367, %v349, 128
    %v384 = vsel %vm368, %v350, 128
    %v385 = vsel %vm369, %v351, 128
    %v386 = vsel %vm370, %v352, 128
    %v387 = vsel %vm371, %v353, 128
    %v388 = vsel %vm372, %v354, 128
    %v389 = vsel %vm373, %v355, 128
    %v390 = vsel %vm374, %v356, 128
    %v391 = vsel %vm375, %v357, 128
    %v392 = vsel %vm376, %v358, 128
    %v393 = vsel %vm377, %v359, 128
    %v394 = vsel %vm378, %v360, 128
    %395 = vset.pattern.permute.xlu0 0
    %396 = vperm.xlu0 %395, %v379
    %v397 = vpop.permute.xlu0 %396
    %398 = vset.pattern.permute.xlu0 0
    %399 = vperm.xlu0 %398, %v380
    %v400 = vpop.permute.xlu0 %399
    %401 = vset.pattern.permute.xlu0 0
    %402 = vperm.xlu0 %401, %v381
    %v403 = vpop.permute.xlu0 %402
    %404 = vset.pattern.permute.xlu0 0
    %405 = vperm.xlu0 %404, %v382
    %v406 = vpop.permute.xlu0 %405
    %407 = vset.pattern.permute.xlu0 0
    %408 = vperm.xlu0 %407, %v383
    %v409 = vpop.permute.xlu0 %408
    %410 = vset.pattern.permute.xlu0 0
    %411 = vperm.xlu0 %410, %v384
    %v412 = vpop.permute.xlu0 %411
    %413 = vset.pattern.permute.xlu0 0
    %414 = vperm.xlu0 %413, %v385
    %v415 = vpop.permute.xlu0 %414
    %416 = vset.pattern.permute.xlu0 0
    %417 = vperm.xlu0 %416, %v386
    %v418 = vpop.permute.xlu0 %417
    %419 = vset.pattern.permute.xlu0 0
    %420 = vperm.xlu0 %419, %v387
    %v421 = vpop.permute.xlu0 %420
    %422 = vset.pattern.permute.xlu0 0
    %423 = vperm.xlu0 %422, %v388
    %v424 = vpop.permute.xlu0 %423
    %425 = vset.pattern.permute.xlu0 0
    %426 = vperm.xlu0 %425, %v389
    %v427 = vpop.permute.xlu0 %426
    %428 = vset.pattern.permute.xlu0 0
    %429 = vperm.xlu0 %428, %v390
    %v430 = vpop.permute.xlu0 %429
    %431 = vset.pattern.permute.xlu0 0
    %432 = vperm.xlu0 %431, %v391
    %v433 = vpop.permute.xlu0 %432
    %434 = vset.pattern.permute.xlu0 0
    %435 = vperm.xlu0 %434, %v392
    %v436 = vpop.permute.xlu0 %435
    %437 = vset.pattern.permute.xlu0 0
    %438 = vperm.xlu0 %437, %v393
    %v439 = vpop.permute.xlu0 %438
    %440 = vset.pattern.permute.xlu0 0
    %441 = vperm.xlu0 %440, %v394
    %v442 = vpop.permute.xlu0 %441
    %vm443 = vcmp.eq.s32.totalorder %v397, %v119
    %vm444 = vcmp.eq.s32.totalorder %v400, %v119
    %vm445 = vcmp.eq.s32.totalorder %v403, %v119
    %vm446 = vcmp.eq.s32.totalorder %v406, %v119
    %vm447 = vcmp.eq.s32.totalorder %v409, %v119
    %vm448 = vcmp.eq.s32.totalorder %v412, %v119
    %vm449 = vcmp.eq.s32.totalorder %v415, %v119
    %vm450 = vcmp.eq.s32.totalorder %v418, %v119
    %vm451 = vcmp.eq.s32.totalorder %v421, %v119
    %vm452 = vcmp.eq.s32.totalorder %v424, %v119
    %vm453 = vcmp.eq.s32.totalorder %v427, %v119
    %vm454 = vcmp.eq.s32.totalorder %v430, %v119
    %vm455 = vcmp.eq.s32.totalorder %v433, %v119
    %vm456 = vcmp.eq.s32.totalorder %v436, %v119
    %vm457 = vcmp.eq.s32.totalorder %v439, %v119
    %vm458 = vcmp.eq.s32.totalorder %v442, %v119
    %v459 = vsel %vm443, 1, 0
    %v460 = vsel %vm444, 1, 0
    %v461 = vsel %vm445, 1, 0
    %v462 = vsel %vm446, 1, 0
    %v463 = vsel %vm447, 1, 0
    %v464 = vsel %vm448, 1, 0
    %v465 = vsel %vm449, 1, 0
    %v466 = vsel %vm450, 1, 0
    %v467 = vsel %vm451, 1, 0
    %v468 = vsel %vm452, 1, 0
    %v469 = vsel %vm453, 1, 0
    %v470 = vsel %vm454, 1, 0
    %v471 = vsel %vm455, 1, 0
    %v472 = vsel %vm456, 1, 0
    %v473 = vsel %vm457, 1, 0
    %v474 = vsel %vm458, 1, 0
    %v475 = vcvt.s32.f32 %v459
    %v476 = vcvt.s32.f32 %v460
    %v477 = vcvt.s32.f32 %v461
    %v478 = vcvt.s32.f32 %v462
    %v479 = vcvt.s32.f32 %v463
    %v480 = vcvt.s32.f32 %v464
    %v481 = vcvt.s32.f32 %v465
    %v482 = vcvt.s32.f32 %v466
    %v483 = vcvt.s32.f32 %v467
    %v484 = vcvt.s32.f32 %v468
    %v485 = vcvt.s32.f32 %v469
    %v486 = vcvt.s32.f32 %v470
    %v487 = vcvt.s32.f32 %v471
    %v488 = vcvt.s32.f32 %v472
    %v489 = vcvt.s32.f32 %v473
    %v490 = vcvt.s32.f32 %v474
    %491 = vmatprep.subr.mxu0 0.0
    %492 = vmatpush1.msra.mxu0 %v475
    %493 = vmatprep.subr.mxu0 0.0
    %494 = vmatpush1.msra.mxu0 %v476
    %495 = vmatprep.subr.mxu0 0.0
    %496 = vmatpush1.msra.mxu0 %v477
    %497 = vmatprep.subr.mxu0 0.0
    %498 = vmatpush1.msra.mxu0 %v478
    %499 = vmatprep.subr.mxu0 0.0
    %500 = vmatpush1.msra.mxu0 %v479
    %501 = vmatprep.subr.mxu0 0.0
    %502 = vmatpush1.msra.mxu0 %v480
    %503 = vmatprep.subr.mxu0 0.0
    %504 = vmatpush1.msra.mxu0 %v481
    %505 = vmatprep.subr.mxu0 0.0
    %506 = vmatpush1.msra.mxu0 %v482
    %507 = vmatprep.subr.mxu0 0.0
    %508 = vmatpush1.msra.mxu0 %v483
    %509 = vmatprep.subr.mxu0 0.0
    %510 = vmatpush1.msra.mxu0 %v484
    %511 = vmatprep.subr.mxu0 0.0
    %512 = vmatpush1.msra.mxu0 %v485
    %513 = vmatprep.subr.mxu0 0.0
    %514 = vmatpush1.msra.mxu0 %v486
    %515 = vmatprep.subr.mxu0 0.0
    %516 = vmatpush1.msra.mxu0 %v487
    %517 = vmatprep.subr.mxu0 0.0
    %518 = vmatpush1.msra.mxu0 %v488
    %519 = vmatprep.subr.mxu0 0.0
    %520 = vmatpush1.msra.mxu0 %v489
    %521 = vmatprep.subr.mxu0 0.0
    %522 = vmatpush1.msra.mxu0 %v490
    %523 = vmatprep.subr.mxu0 0.0
    %524 = vmatpush1.msra.mxu0 0.0
    %525 = vmatprep.subr.mxu0 0.0
    %526 = vmatpush1.msra.mxu0 0.0
    %527 = vmatprep.subr.mxu0 0.0
    %528 = vmatpush1.msra.mxu0 0.0
    %529 = vmatprep.subr.mxu0 0.0
    %530 = vmatpush1.msra.mxu0 0.0
    %531 = vmatprep.subr.mxu0 0.0
    %532 = vmatpush1.msra.mxu0 0.0
    %533 = vmatprep.subr.mxu0 0.0
    %534 = vmatpush1.msra.mxu0 0.0
    %535 = vmatprep.subr.mxu0 0.0
    %536 = vmatpush1.msra.mxu0 0.0
    %537 = vmatprep.subr.mxu0 0.0
    %538 = vmatpush1.msra.mxu0 0.0
    %539 = vmatprep.subr.mxu0 0.0
    %540 = vmatpush1.msra.mxu0 0.0
    %541 = vmatprep.subr.mxu0 0.0
    %542 = vmatpush1.msra.mxu0 0.0
    %543 = vmatprep.subr.mxu0 0.0
    %544 = vmatpush1.msra.mxu0 0.0
    %545 = vmatprep.subr.mxu0 0.0
    %546 = vmatpush1.msra.mxu0 0.0
    %547 = vmatprep.subr.mxu0 0.0
    %548 = vmatpush1.msra.mxu0 0.0
    %549 = vmatprep.subr.mxu0 0.0
    %550 = vmatpush1.msra.mxu0 0.0
    %551 = vmatprep.subr.mxu0 0.0
    %552 = vmatpush1.msra.mxu0 0.0
    %553 = vmatprep.subr.mxu0 0.0
    %554 = vmatpush1.msra.mxu0 0.0
    %555 = vmatprep.mubr.f32.mxu0 0.0
    %556 = vmatmul.mubr.f32.gmra.mrb[0].mxu0 %v362
    %v557 = vpop.f32.mrb[0].mxu0
    %v558 = vadd.f32 0.0, %v557
    %v559 = vpop.f32.mrb[0].mxu0
    %560 = vdwg.mxu0
    %v561 = vstv %s100
    %vm562 = vcmp.lt.s32.totalorder %v119, %v561
    %v563 = vcvt.f32.s32.to.zero.pseudo %v558
    %v564 = vsel %vm562, %v563, 4294967295
    %565 = vst [vmem:[#allocation5] sm:$0x3] %v564
    %v566 = vadd.s32 %v119, 128
    %vm567 = vcmp.eq.s32.totalorder %v33, 1
    %vm568 = vcmp.eq.s32.totalorder %v34, 1
    %vm569 = vcmp.eq.s32.totalorder %v35, 1
    %vm570 = vcmp.eq.s32.totalorder %v36, 1
    %vm571 = vcmp.eq.s32.totalorder %v37, 1
    %vm572 = vcmp.eq.s32.totalorder %v38, 1
    %vm573 = vcmp.eq.s32.totalorder %v39, 1
    %vm574 = vcmp.eq.s32.totalorder %v40, 1
    %vm575 = vcmp.eq.s32.totalorder %v41, 1
    %vm576 = vcmp.eq.s32.totalorder %v42, 1
    %vm577 = vcmp.eq.s32.totalorder %v43, 1
    %vm578 = vcmp.eq.s32.totalorder %v44, 1
    %vm579 = vcmp.eq.s32.totalorder %v45, 1
    %vm580 = vcmp.eq.s32.totalorder %v46, 1
    %vm581 = vcmp.eq.s32.totalorder %v47, 1
    %vm582 = vcmp.eq.s32.totalorder %v48, 1
    %v583 = vsel %vm567, %v329, 256
    %v584 = vsel %vm568, %v330, 256
    %v585 = vsel %vm569, %v331, 256
    %v586 = vsel %vm570, %v332, 256
    %v587 = vsel %vm571, %v333, 256
    %v588 = vsel %vm572, %v334, 256
    %v589 = vsel %vm573, %v335, 256
    %v590 = vsel %vm574, %v336, 256
    %v591 = vsel %vm575, %v337, 256
    %v592 = vsel %vm576, %v338, 256
    %v593 = vsel %vm577, %v339, 256
    %v594 = vsel %vm578, %v340, 256
    %v595 = vsel %vm579, %v341, 256
    %v596 = vsel %vm580, %v342, 256
    %v597 = vsel %vm581, %v343, 256
    %v598 = vsel %vm582, %v344, 256
    %599 = vset.pattern.permute.xlu0 0
    %600 = vperm.xlu0 %599, %v583
    %v601 = vpop.permute.xlu0 %600
    %602 = vset.pattern.permute.xlu0 0
    %603 = vperm.xlu0 %602, %v584
    %v604 = vpop.permute.xlu0 %603
    %605 = vset.pattern.permute.xlu0 0
    %606 = vperm.xlu0 %605, %v585
    %v607 = vpop.permute.xlu0 %606
    %608 = vset.pattern.permute.xlu0 0
    %609 = vperm.xlu0 %608, %v586
    %v610 = vpop.permute.xlu0 %609
    %611 = vset.pattern.permute.xlu0 0
    %612 = vperm.xlu0 %611, %v587
    %v613 = vpop.permute.xlu0 %612
    %614 = vset.pattern.permute.xlu0 0
    %615 = vperm.xlu0 %614, %v588
    %v616 = vpop.permute.xlu0 %615
    %617 = vset.pattern.permute.xlu0 0
    %618 = vperm.xlu0 %617, %v589
    %v619 = vpop.permute.xlu0 %618
    %620 = vset.pattern.permute.xlu0 0
    %621 = vperm.xlu0 %620, %v590
    %v622 = vpop.permute.xlu0 %621
    %623 = vset.pattern.permute.xlu0 0
    %624 = vperm.xlu0 %623, %v591
    %v625 = vpop.permute.xlu0 %624
    %626 = vset.pattern.permute.xlu0 0
    %627 = vperm.xlu0 %626, %v592
    %v628 = vpop.permute.xlu0 %627
    %629 = vset.pattern.permute.xlu0 0
    %630 = vperm.xlu0 %629, %v593
    %v631 = vpop.permute.xlu0 %630
    %632 = vset.pattern.permute.xlu0 0
    %633 = vperm.xlu0 %632, %v594
    %v634 = vpop.permute.xlu0 %633
    %635 = vset.pattern.permute.xlu0 0
    %636 = vperm.xlu0 %635, %v595
    %v637 = vpop.permute.xlu0 %636
    %638 = vset.pattern.permute.xlu0 0
    %639 = vperm.xlu0 %638, %v596
    %v640 = vpop.permute.xlu0 %639
    %641 = vset.pattern.permute.xlu0 0
    %642 = vperm.xlu0 %641, %v597
    %v643 = vpop.permute.xlu0 %642
    %644 = vset.pattern.permute.xlu0 0
    %645 = vperm.xlu0 %644, %v598
    %v646 = vpop.permute.xlu0 %645
    %vm647 = vcmp.eq.s32.totalorder %v601, %v119
    %vm648 = vcmp.eq.s32.totalorder %v601, %v566
    %vm649 = vcmp.eq.s32.totalorder %v604, %v119
    %vm650 = vcmp.eq.s32.totalorder %v604, %v566
    %vm651 = vcmp.eq.s32.totalorder %v607, %v119
    %vm652 = vcmp.eq.s32.totalorder %v607, %v566
    %vm653 = vcmp.eq.s32.totalorder %v610, %v119
    %vm654 = vcmp.eq.s32.totalorder %v610, %v566
    %vm655 = vcmp.eq.s32.totalorder %v613, %v119
    %vm656 = vcmp.eq.s32.totalorder %v613, %v566
    %vm657 = vcmp.eq.s32.totalorder %v616, %v119
    %vm658 = vcmp.eq.s32.totalorder %v616, %v566
    %vm659 = vcmp.eq.s32.totalorder %v619, %v119
    %vm660 = vcmp.eq.s32.totalorder %v619, %v566
    %vm661 = vcmp.eq.s32.totalorder %v622, %v119
    %vm662 = vcmp.eq.s32.totalorder %v622, %v566
    %vm663 = vcmp.eq.s32.totalorder %v625, %v119
    %vm664 = vcmp.eq.s32.totalorder %v625, %v566
    %vm665 = vcmp.eq.s32.totalorder %v628, %v119
    %vm666 = vcmp.eq.s32.totalorder %v628, %v566
    %vm667 = vcmp.eq.s32.totalorder %v631, %v119
    %vm668 = vcmp.eq.s32.totalorder %v631, %v566
    %vm669 = vcmp.eq.s32.totalorder %v634, %v119
    %vm670 = vcmp.eq.s32.totalorder %v634, %v566
    %vm671 = vcmp.eq.s32.totalorder %v637, %v119
    %vm672 = vcmp.eq.s32.totalorder %v637, %v566
    %vm673 = vcmp.eq.s32.totalorder %v640, %v119
    %vm674 = vcmp.eq.s32.totalorder %v640, %v566
    %vm675 = vcmp.eq.s32.totalorder %v643, %v119
    %vm676 = vcmp.eq.s32.totalorder %v643, %v566
    %vm677 = vcmp.eq.s32.totalorder %v646, %v119
    %vm678 = vcmp.eq.s32.totalorder %v646, %v566
    %v679 = vsel %vm647, 1, 0
    %v680 = vsel %vm648, 1, 0
    %v681 = vsel %vm649, 1, 0
    %v682 = vsel %vm650, 1, 0
    %v683 = vsel %vm651, 1, 0
    %v684 = vsel %vm652, 1, 0
    %v685 = vsel %vm653, 1, 0
    %v686 = vsel %vm654, 1, 0
    %v687 = vsel %vm655, 1, 0
    %v688 = vsel %vm656, 1, 0
    %v689 = vsel %vm657, 1, 0
    %v690 = vsel %vm658, 1, 0
    %v691 = vsel %vm659, 1, 0
    %v692 = vsel %vm660, 1, 0
    %v693 = vsel %vm661, 1, 0
    %v694 = vsel %vm662, 1, 0
    %v695 = vsel %vm663, 1, 0
    %v696 = vsel %vm664, 1, 0
    %v697 = vsel %vm665, 1, 0
    %v698 = vsel %vm666, 1, 0
    %v699 = vsel %vm667, 1, 0
    %v700 = vsel %vm668, 1, 0
    %v701 = vsel %vm669, 1, 0
    %v702 = vsel %vm670, 1, 0
    %v703 = vsel %vm671, 1, 0
    %v704 = vsel %vm672, 1, 0
    %v705 = vsel %vm673, 1, 0
    %v706 = vsel %vm674, 1, 0
    %v707 = vsel %vm675, 1, 0
    %v708 = vsel %vm676, 1, 0
    %v709 = vsel %vm677, 1, 0
    %v710 = vsel %vm678, 1, 0
    %v711 = vcvt.s32.f32 %v679
    %v712 = vcvt.s32.f32 %v680
    %v713 = vcvt.s32.f32 %v681
    %v714 = vcvt.s32.f32 %v682
    %v715 = vcvt.s32.f32 %v683
    %v716 = vcvt.s32.f32 %v684
    %v717 = vcvt.s32.f32 %v685
    %v718 = vcvt.s32.f32 %v686
    %v719 = vcvt.s32.f32 %v687
    %v720 = vcvt.s32.f32 %v688
    %v721 = vcvt.s32.f32 %v689
    %v722 = vcvt.s32.f32 %v690
    %v723 = vcvt.s32.f32 %v691
    %v724 = vcvt.s32.f32 %v692
    %v725 = vcvt.s32.f32 %v693
    %v726 = vcvt.s32.f32 %v694
    %v727 = vcvt.s32.f32 %v695
    %v728 = vcvt.s32.f32 %v696
    %v729 = vcvt.s32.f32 %v697
    %v730 = vcvt.s32.f32 %v698
    %v731 = vcvt.s32.f32 %v699
    %v732 = vcvt.s32.f32 %v700
    %v733 = vcvt.s32.f32 %v701
    %v734 = vcvt.s32.f32 %v702
    %v735 = vcvt.s32.f32 %v703
    %v736 = vcvt.s32.f32 %v704
    %v737 = vcvt.s32.f32 %v705
    %v738 = vcvt.s32.f32 %v706
    %v739 = vcvt.s32.f32 %v707
    %v740 = vcvt.s32.f32 %v708
    %v741 = vcvt.s32.f32 %v709
    %v742 = vcvt.s32.f32 %v710
    %v743 = vstv %s99
    %v744 = vadd.s32 %v743, %v329
    %v745 = vadd.s32 %v743, %v330
    %v746 = vadd.s32 %v743, %v331
    %v747 = vadd.s32 %v743, %v332
    %v748 = vadd.s32 %v743, %v333
    %v749 = vadd.s32 %v743, %v334
    %v750 = vadd.s32 %v743, %v335
    %v751 = vadd.s32 %v743, %v336
    %v752 = vadd.s32 %v743, %v337
    %v753 = vadd.s32 %v743, %v338
    %v754 = vadd.s32 %v743, %v339
    %v755 = vadd.s32 %v743, %v340
    %v756 = vadd.s32 %v743, %v341
    %v757 = vadd.s32 %v743, %v342
    %v758 = vadd.s32 %v743, %v343
    %v759 = vadd.s32 %v743, %v344
    %v760 = vsel %vm567, %v744, 256
    %v761 = vsel %vm568, %v745, 256
    %v762 = vsel %vm569, %v746, 256
    %v763 = vsel %vm570, %v747, 256
    %v764 = vsel %vm571, %v748, 256
    %v765 = vsel %vm572, %v749, 256
    %v766 = vsel %vm573, %v750, 256
    %v767 = vsel %vm574, %v751, 256
    %v768 = vsel %vm575, %v752, 256
    %v769 = vsel %vm576, %v753, 256
    %v770 = vsel %vm577, %v754, 256
    %v771 = vsel %vm578, %v755, 256
    %v772 = vsel %vm579, %v756, 256
    %v773 = vsel %vm580, %v757, 256
    %v774 = vsel %vm581, %v758, 256
    %v775 = vsel %vm582, %v759, 256
    %776 = vset.pattern.permute.xlu0 0
    %777 = vperm.xlu0 %776, %v760
    %v778 = vpop.permute.xlu0 %777
    %779 = vset.pattern.permute.xlu0 0
    %780 = vperm.xlu0 %779, %v761
    %v781 = vpop.permute.xlu0 %780
    %782 = vset.pattern.permute.xlu0 0
    %783 = vperm.xlu0 %782, %v762
    %v784 = vpop.permute.xlu0 %783
    %785 = vset.pattern.permute.xlu0 0
    %786 = vperm.xlu0 %785, %v763
    %v787 = vpop.permute.xlu0 %786
    %788 = vset.pattern.permute.xlu0 0
    %789 = vperm.xlu0 %788, %v764
    %v790 = vpop.permute.xlu0 %789
    %791 = vset.pattern.permute.xlu0 0
    %792 = vperm.xlu0 %791, %v765
    %v793 = vpop.permute.xlu0 %792
    %794 = vset.pattern.permute.xlu0 0
    %795 = vperm.xlu0 %794, %v766
    %v796 = vpop.permute.xlu0 %795
    %797 = vset.pattern.permute.xlu0 0
    %798 = vperm.xlu0 %797, %v767
    %v799 = vpop.permute.xlu0 %798
    %800 = vset.pattern.permute.xlu0 0
    %801 = vperm.xlu0 %800, %v768
    %v802 = vpop.permute.xlu0 %801
    %803 = vset.pattern.permute.xlu0 0
    %804 = vperm.xlu0 %803, %v769
    %v805 = vpop.permute.xlu0 %804
    %806 = vset.pattern.permute.xlu0 0
    %807 = vperm.xlu0 %806, %v770
    %v808 = vpop.permute.xlu0 %807
    %809 = vset.pattern.permute.xlu0 0
    %810 = vperm.xlu0 %809, %v771
    %v811 = vpop.permute.xlu0 %810
    %812 = vset.pattern.permute.xlu0 0
    %813 = vperm.xlu0 %812, %v772
    %v814 = vpop.permute.xlu0 %813
    %815 = vset.pattern.permute.xlu0 0
    %816 = vperm.xlu0 %815, %v773
    %v817 = vpop.permute.xlu0 %816
    %818 = vset.pattern.permute.xlu0 0
    %819 = vperm.xlu0 %818, %v774
    %v820 = vpop.permute.xlu0 %819
    %821 = vset.pattern.permute.xlu0 0
    %822 = vperm.xlu0 %821, %v775
    %v823 = vpop.permute.xlu0 %822
    %vm824 = vcmp.eq.s32.totalorder %v778, %v119
    %vm825 = vcmp.eq.s32.totalorder %v778, %v566
    %vm826 = vcmp.eq.s32.totalorder %v781, %v119
    %vm827 = vcmp.eq.s32.totalorder %v781, %v566
    %vm828 = vcmp.eq.s32.totalorder %v784, %v119
    %vm829 = vcmp.eq.s32.totalorder %v784, %v566
    %vm830 = vcmp.eq.s32.totalorder %v787, %v119
    %vm831 = vcmp.eq.s32.totalorder %v787, %v566
    %vm832 = vcmp.eq.s32.totalorder %v790, %v119
    %vm833 = vcmp.eq.s32.totalorder %v790, %v566
    %vm834 = vcmp.eq.s32.totalorder %v793, %v119
    %vm835 = vcmp.eq.s32.totalorder %v793, %v566
    %vm836 = vcmp.eq.s32.totalorder %v796, %v119
    %vm837 = vcmp.eq.s32.totalorder %v796, %v566
    %vm838 = vcmp.eq.s32.totalorder %v799, %v119
    %vm839 = vcmp.eq.s32.totalorder %v799, %v566
    %vm840 = vcmp.eq.s32.totalorder %v802, %v119
    %vm841 = vcmp.eq.s32.totalorder %v802, %v566
    %vm842 = vcmp.eq.s32.totalorder %v805, %v119
    %vm843 = vcmp.eq.s32.totalorder %v805, %v566
    %vm844 = vcmp.eq.s32.totalorder %v808, %v119
    %vm845 = vcmp.eq.s32.totalorder %v808, %v566
    %vm846 = vcmp.eq.s32.totalorder %v811, %v119
    %vm847 = vcmp.eq.s32.totalorder %v811, %v566
    %vm848 = vcmp.eq.s32.totalorder %v814, %v119
    %vm849 = vcmp.eq.s32.totalorder %v814, %v566
    %vm850 = vcmp.eq.s32.totalorder %v817, %v119
    %vm851 = vcmp.eq.s32.totalorder %v817, %v566
    %vm852 = vcmp.eq.s32.totalorder %v820, %v119
    %vm853 = vcmp.eq.s32.totalorder %v820, %v566
    %vm854 = vcmp.eq.s32.totalorder %v823, %v119
    %vm855 = vcmp.eq.s32.totalorder %v823, %v566
    %v856 = vsel %vm824, 1, 0
    %v857 = vsel %vm825, 1, 0
    %v858 = vsel %vm826, 1, 0
    %v859 = vsel %vm827, 1, 0
    %v860 = vsel %vm828, 1, 0
    %v861 = vsel %vm829, 1, 0
    %v862 = vsel %vm830, 1, 0
    %v863 = vsel %vm831, 1, 0
    %v864 = vsel %vm832, 1, 0
    %v865 = vsel %vm833, 1, 0
    %v866 = vsel %vm834, 1, 0
    %v867 = vsel %vm835, 1, 0
    %v868 = vsel %vm836, 1, 0
    %v869 = vsel %vm837, 1, 0
    %v870 = vsel %vm838, 1, 0
    %v871 = vsel %vm839, 1, 0
    %v872 = vsel %vm840, 1, 0
    %v873 = vsel %vm841, 1, 0
    %v874 = vsel %vm842, 1, 0
    %v875 = vsel %vm843, 1, 0
    %v876 = vsel %vm844, 1, 0
    %v877 = vsel %vm845, 1, 0
    %v878 = vsel %vm846, 1, 0
    %v879 = vsel %vm847, 1, 0
    %v880 = vsel %vm848, 1, 0
    %v881 = vsel %vm849, 1, 0
    %v882 = vsel %vm850, 1, 0
    %v883 = vsel %vm851, 1, 0
    %v884 = vsel %vm852, 1, 0
    %v885 = vsel %vm853, 1, 0
    %v886 = vsel %vm854, 1, 0
    %v887 = vsel %vm855, 1, 0
    %v888 = vcvt.s32.f32 %v856
    %v889 = vcvt.s32.f32 %v857
    %v890 = vcvt.s32.f32 %v858
    %v891 = vcvt.s32.f32 %v859
    %v892 = vcvt.s32.f32 %v860
    %v893 = vcvt.s32.f32 %v861
    %v894 = vcvt.s32.f32 %v862
    %v895 = vcvt.s32.f32 %v863
    %v896 = vcvt.s32.f32 %v864
    %v897 = vcvt.s32.f32 %v865
    %v898 = vcvt.s32.f32 %v866
    %v899 = vcvt.s32.f32 %v867
    %v900 = vcvt.s32.f32 %v868
    %v901 = vcvt.s32.f32 %v869
    %v902 = vcvt.s32.f32 %v870
    %v903 = vcvt.s32.f32 %v871
    %v904 = vcvt.s32.f32 %v872
    %v905 = vcvt.s32.f32 %v873
    %v906 = vcvt.s32.f32 %v874
    %v907 = vcvt.s32.f32 %v875
    %v908 = vcvt.s32.f32 %v876
    %v909 = vcvt.s32.f32 %v877
    %v910 = vcvt.s32.f32 %v878
    %v911 = vcvt.s32.f32 %v879
    %v912 = vcvt.s32.f32 %v880
    %v913 = vcvt.s32.f32 %v881
    %v914 = vcvt.s32.f32 %v882
    %v915 = vcvt.s32.f32 %v883
    %v916 = vcvt.s32.f32 %v884
    %v917 = vcvt.s32.f32 %v885
    %v918 = vcvt.s32.f32 %v886
    %v919 = vcvt.s32.f32 %v887
    %v920 = vld [vmem:[%s0 + $0x1] sm:$0x1]
    %v921 = vld [vmem:[%s0] sm:$0x1]
    %v922 = vrot.slane %v921, 7
    %vm923 = vcmask 1040384
    %v924 = vsel %vm923, %v920, %v922
    %v925 = vcvt.s32.f32 %v924
    %926 = vmatprep.subr.mxu0 %v889
    %927 = vmatpush1.msra.mxu0 %v888
    %928 = vmatprep.subr.mxu0 %v891
    %929 = vmatpush1.msra.mxu0 %v890
    %930 = vmatprep.subr.mxu0 %v893
    %931 = vmatpush1.msra.mxu0 %v892
    %932 = vmatprep.subr.mxu0 %v895
    %933 = vmatpush1.msra.mxu0 %v894
    %934 = vmatprep.subr.mxu0 %v897
    %935 = vmatpush1.msra.mxu0 %v896
    %936 = vmatprep.subr.mxu0 %v899
    %937 = vmatpush1.msra.mxu0 %v898
    %938 = vmatprep.subr.mxu0 %v901
    %939 = vmatpush1.msra.mxu0 %v900
    %940 = vmatprep.subr.mxu0 %v903
    %941 = vmatpush1.msra.mxu0 %v902
    %942 = vmatprep.subr.mxu0 %v905
    %943 = vmatpush1.msra.mxu0 %v904
    %944 = vmatprep.subr.mxu0 %v907
    %945 = vmatpush1.msra.mxu0 %v906
    %946 = vmatprep.subr.mxu0 %v909
    %947 = vmatpush1.msra.mxu0 %v908
    %948 = vmatprep.subr.mxu0 %v911
    %949 = vmatpush1.msra.mxu0 %v910
    %950 = vmatprep.subr.mxu0 %v913
    %951 = vmatpush1.msra.mxu0 %v912
    %952 = vmatprep.subr.mxu0 %v915
    %953 = vmatpush1.msra.mxu0 %v914
    %954 = vmatprep.subr.mxu0 %v917
    %955 = vmatpush1.msra.mxu0 %v916
    %956 = vmatprep.subr.mxu0 %v919
    %957 = vmatpush1.msra.mxu0 %v918
    %958 = vmatprep.subr.mxu0 0.0
    %959 = vmatpush1.msra.mxu0 0.0
    %960 = vmatprep.subr.mxu0 0.0
    %961 = vmatpush1.msra.mxu0 0.0
    %962 = vmatprep.subr.mxu0 0.0
    %963 = vmatpush1.msra.mxu0 0.0
    %964 = vmatprep.subr.mxu0 0.0
    %965 = vmatpush1.msra.mxu0 0.0
    %966 = vmatprep.subr.mxu0 0.0
    %967 = vmatpush1.msra.mxu0 0.0
    %968 = vmatprep.subr.mxu0 0.0
    %969 = vmatpush1.msra.mxu0 0.0
    %970 = vmatprep.subr.mxu0 0.0
    %971 = vmatpush1.msra.mxu0 0.0
    %972 = vmatprep.subr.mxu0 0.0
    %973 = vmatpush1.msra.mxu0 0.0
    %974 = vmatprep.subr.mxu0 0.0
    %975 = vmatpush1.msra.mxu0 0.0
    %976 = vmatprep.subr.mxu0 0.0
    %977 = vmatpush1.msra.mxu0 0.0
    %978 = vmatprep.subr.mxu0 0.0
    %979 = vmatpush1.msra.mxu0 0.0
    %980 = vmatprep.subr.mxu0 0.0
    %981 = vmatpush1.msra.mxu0 0.0
    %982 = vmatprep.subr.mxu0 0.0
    %983 = vmatpush1.msra.mxu0 0.0
    %984 = vmatprep.subr.mxu0 0.0
    %985 = vmatpush1.msra.mxu0 0.0
    %986 = vmatprep.subr.mxu0 0.0
    %987 = vmatpush1.msra.mxu0 0.0
    %988 = vmatprep.subr.mxu0 0.0
    %989 = vmatpush1.msra.mxu0 0.0
    %990 = vmatprep.mubr.f32.mxu0 0.0
    %991 = vmatmul.mubr.f32.gmra.mrb[0].mxu0 %v925
    %v992 = vpop.f32.mrb[0].mxu0
    %v993 = vadd.f32 0.0, %v992
    %v994 = vpop.f32.mrb[0].mxu0
    %v995 = vadd.f32 0.0, %v994
    %996 = vdwg.mxu0
    %997 = vmatprep.subr.mxu0 %v712
    %998 = vmatpush1.msra.mxu0 %v711
    %999 = vmatprep.subr.mxu0 %v714
    %1000 = vmatpush1.msra.mxu0 %v713
    %1001 = vmatprep.subr.mxu0 %v716
    %1002 = vmatpush1.msra.mxu0 %v715
    %1003 = vmatprep.subr.mxu0 %v718
    %1004 = vmatpush1.msra.mxu0 %v717
    %1005 = vmatprep.subr.mxu0 %v720
    %1006 = vmatpush1.msra.mxu0 %v719
    %1007 = vmatprep.subr.mxu0 %v722
    %1008 = vmatpush1.msra.mxu0 %v721
    %1009 = vmatprep.subr.mxu0 %v724
    %1010 = vmatpush1.msra.mxu0 %v723
    %1011 = vmatprep.subr.mxu0 %v726
    %1012 = vmatpush1.msra.mxu0 %v725
    %1013 = vmatprep.subr.mxu0 %v728
    %1014 = vmatpush1.msra.mxu0 %v727
    %1015 = vmatprep.subr.mxu0 %v730
    %1016 = vmatpush1.msra.mxu0 %v729
    %1017 = vmatprep.subr.mxu0 %v732
    %1018 = vmatpush1.msra.mxu0 %v731
    %1019 = vmatprep.subr.mxu0 %v734
    %1020 = vmatpush1.msra.mxu0 %v733
    %1021 = vmatprep.subr.mxu0 %v736
    %1022 = vmatpush1.msra.mxu0 %v735
    %1023 = vmatprep.subr.mxu0 %v738
    %1024 = vmatpush1.msra.mxu0 %v737
    %1025 = vmatprep.subr.mxu0 %v740
    %1026 = vmatpush1.msra.mxu0 %v739
    %1027 = vmatprep.subr.mxu0 %v742
    %1028 = vmatpush1.msra.mxu0 %v741
    %1029 = vmatprep.subr.mxu0 0.0
    %1030 = vmatpush1.msra.mxu0 0.0
    %1031 = vmatprep.subr.mxu0 0.0
    %1032 = vmatpush1.msra.mxu0 0.0
    %1033 = vmatprep.subr.mxu0 0.0
    %1034 = vmatpush1.msra.mxu0 0.0
    %1035 = vmatprep.subr.mxu0 0.0
    %1036 = vmatpush1.msra.mxu0 0.0
    %1037 = vmatprep.subr.mxu0 0.0
    %1038 = vmatpush1.msra.mxu0 0.0
    %1039 = vmatprep.subr.mxu0 0.0
    %1040 = vmatpush1.msra.mxu0 0.0
    %1041 = vmatprep.subr.mxu0 0.0
    %1042 = vmatpush1.msra.mxu0 0.0
    %1043 = vmatprep.subr.mxu0 0.0
    %1044 = vmatpush1.msra.mxu0 0.0
    %1045 = vmatprep.subr.mxu0 0.0
    %1046 = vmatpush1.msra.mxu0 0.0
    %1047 = vmatprep.subr.mxu0 0.0
    %1048 = vmatpush1.msra.mxu0 0.0
    %1049 = vmatprep.subr.mxu0 0.0
    %1050 = vmatpush1.msra.mxu0 0.0
    %1051 = vmatprep.subr.mxu0 0.0
    %1052 = vmatpush1.msra.mxu0 0.0
    %1053 = vmatprep.subr.mxu0 0.0
    %1054 = vmatpush1.msra.mxu0 0.0
    %1055 = vmatprep.subr.mxu0 0.0
    %1056 = vmatpush1.msra.mxu0 0.0
    %1057 = vmatprep.subr.mxu0 0.0
    %1058 = vmatpush1.msra.mxu0 0.0
    %1059 = vmatprep.subr.mxu0 0.0
    %1060 = vmatpush1.msra.mxu0 0.0
    %1061 = vmatprep.mubr.f32.mxu0 0.0
    %1062 = vmatmul.mubr.f32.gmra.mrb[0].mxu0 %v362
    %v1063 = vpop.f32.mrb[0].mxu0
    %v1064 = vadd.f32 %v993, %v1063
    %v1065 = vpop.f32.mrb[0].mxu0
    %v1066 = vadd.f32 %v995, %v1065
    %1067 = vdwg.mxu0
    %s1068 = smul.u32 %s99, 2
    %v1069 = vstv %s1068
    %vm1070 = vcmp.lt.s32.totalorder %v119, %v1069
    %vm1071 = vcmp.lt.s32.totalorder %v566, %v1069
    %v1072 = vcvt.f32.s32.to.zero.pseudo %v1064
    %v1073 = vcvt.f32.s32.to.zero.pseudo %v1066
    %v1074 = vsel %vm1070, %v1072, 4294967295
    %v1075 = vsel %vm1071, %v1073, 4294967295
    %v1076 = vcombine.low %v1074, %v1075
    %v1078 = vunpack.c.l.s4 1983009808
    %v1079 = vunpack.c.0.s8 %v1078
    %v1080 = vlaneseq
    %v1081 = vshrl.u32 %v1080, 7
    %v1082 = vsub.s32 %v1079, %v1081
    %v1083 = vrot.slane %v1076, %v1082
    %1084 = vst [vmem:[#allocation2] sm:$0xf] %v1083
    %s1085 = scalar_lea.smem [#allocation7], 0
    %1086 = sst [smem:[%s1085]] %s99
    // Predicated region
    $region10: #{tpu_custom_call.1} parent=1 // pred_check
      _
    $region11: #{tpu_custom_call.1} parent=1 // pred_check_branch
      %1088 = sbr.rel (0) target = $region13
    $region12: #{tpu_custom_call.1} parent=1 // pred_region
      %s1090 = ssub.s32 64, 64
      %1091 = vsyncadd [#allocation3], %s1090
      %s1093 = sshll.u32 [#allocation2], 4
      %s1094 = int_to_ptr.vmem [resolvable:$true] %s1093
      %1096 = dma.vmem_to_hbm [thread:$0]  %s1094, 64, %s2, [#allocation3]
    $region13: #{tpu_custom_call.1} parent=1 // pred_fallthru
      _
    // Predicated region
    $region14: #{tpu_custom_call.1} parent=1 // pred_check
      _
    $region15: #{tpu_custom_call.1} parent=1 // pred_check_branch
      %1098 = sbr.rel (0) target = $region17
    $region16: #{tpu_custom_call.1} parent=1 // pred_region
      %s1100 = ssub.s32 32, 32
      %1101 = vsyncadd [#allocation6], %s1100
      %s1103 = sshll.u32 [#allocation5], 4
      %s1104 = int_to_ptr.vmem [resolvable:$true] %s1103
      %1106 = dma.vmem_to_hbm [thread:$0]  %s1104, 32, %s3, [#allocation6]
    $region17: #{tpu_custom_call.1} parent=1 // pred_fallthru
      _
    // Predicated region
    $region18: #{tpu_custom_call.1} parent=1 // pred_check
      _
    $region19: #{tpu_custom_call.1} parent=1 // pred_check_branch
      %1108 = sbr.rel (0) target = $region21
    $region20: #{tpu_custom_call.1} parent=1 // pred_region
      %s1110 = ssub.s32 16, 16
      %1111 = vsyncadd [#allocation4], %s1110
      %1114 = dma.smem_to_hbm [#allocation7], 16, %s4, [#allocation4]
    $region21: #{tpu_custom_call.1} parent=1 // pred_fallthru
      _
    // Predicated region
    $region22: #{tpu_custom_call.1} parent=1 // pred_check
      _
    $region23: #{tpu_custom_call.1} parent=1 // pred_check_branch
      %1116 = sbr.rel (0) target = $region25
    $region24: #{tpu_custom_call.1} parent=1 // pred_region
      %1117 = dma.done [#allocation3], 64
    $region25: #{tpu_custom_call.1} parent=1 // pred_fallthru
      _
    // Predicated region
    $region26: #{tpu_custom_call.1} parent=1 // pred_check
      _
    $region27: #{tpu_custom_call.1} parent=1 // pred_check_branch
      %1119 = sbr.rel (0) target = $region29
    $region28: #{tpu_custom_call.1} parent=1 // pred_region
      %1120 = dma.done [#allocation6], 32
    $region29: #{tpu_custom_call.1} parent=1 // pred_fallthru
      _
    // Predicated region
    $region30: #{tpu_custom_call.1} parent=1 // pred_check
      _
    $region31: #{tpu_custom_call.1} parent=1 // pred_check_branch
      %1122 = sbr.rel (0) target = $region33
    $region32: #{tpu_custom_call.1} parent=1 // pred_region
      %1123 = dma.done [#allocation4], 16
    $region33: #{tpu_custom_call.1} parent=1 // pred_fallthru
      _
    %1124 = sfence
    %1125 = vsyncpa [#allocation3], 1
    %1126 = vsyncpa [#allocation6], 1
    %1127 = vsyncpa [#allocation4], 1

</llo_original>
